<compile_context>
chip_gen: v5e
topology: v5e:2x2
jax: 0.10.0
libtpu: 0.0.40
codegen_flags: <defaults>
</compile_context>

<pallas_src>
import functools

import jax
import jax.numpy as jnp
from jax import lax
from jax.experimental import pallas as pl
from jax.experimental.pallas import tpu as pltpu

LAM = 0.5
EPSILON = 1e-5   # present in the torch module but only feeds dead code (`p`)

LANES = 128
MAX_BLOCK_ROWS = 8192                # (8192, 128) f32 = 4 MiB per input per block
VMEM_LIMIT_BYTES = 32 * 1024 * 1024  # inputs double-buffered ~16 MiB f32; safe on v5e/v6e/v7x


def _num_tensorcores() -> int:
    """2 only on chips whose TensorCores are exposed to a single Pallas program."""
    try:
        kind = jax.devices()[0].device_kind.lower()
    except Exception:
        return 1
    if ("v4" in kind) or ("v7" in kind) or ("7x" in kind):
        return 2
    return 1  # v5e / v6e (single TensorCore): avoid ghost-block waste


def _round_up(v, m):
    return ((v + m - 1) // m) * m


def _entropy_terms(x, y):
    """Per-element -log_softmax([sigmoid(x), 1-sigmoid(x)])[target(y)].

    Stable / cheap form: u = sigmoid(x) - 0.5 = 0.5*tanh(x/2);
    nll = (|u| - s*u) + log(1 + exp(-2|u|)), s = +1 where y >= 0 else -1.
    3 EUP pushes (tanh, exp, log), no exact divides.  Matches the literal
    torch formulation to <1e-7 wherever the latter is finite.
    """
    u = 0.5 * jnp.tanh(0.5 * x)
    au = jnp.abs(u)
    su = jnp.where(y >= 0.0, u, -u)
    return (au - su) + jnp.log(1.0 + jnp.exp(-2.0 * au))


def _mse_entropy_kernel(x_ref, y_ref, o_ref, acc_sq, acc_nll, *,
                        block_rows, blocks_per_core, nblocks, tail_rows,
                        has_ghost):
    c = pl.program_id(0)          # core axis ("parallel")
    i = pl.program_id(1)          # row-block axis ("arbitrary" / sequential)
    block_idx = c * blocks_per_core + i

    @pl.when(i == 0)
    def _():
        acc_sq[...] = jnp.zeros_like(acc_sq)
        acc_nll[...] = jnp.zeros_like(acc_nll)

    def accumulate(valid_rows=None):
        x = x_ref[...].astype(jnp.float32)     # upcast narrow dtypes in VMEM
        y = y_ref[...].astype(jnp.float32)

        d = x - y
        sq = d * d
        nll = _entropy_terms(x, y)

        if valid_rows is not None:             # only emitted for the tail block
            rid = lax.broadcasted_iota(jnp.int32, (block_rows, LANES), 0)
            mask = rid < valid_rows            # valid_rows is a static Python int
            sq = jnp.where(mask, sq, 0.0)
            nll = jnp.where(mask, nll, 0.0)

        # fold the block into the (8, 128) accumulators with pure VPU adds
        acc_sq[...] += sq.reshape(block_rows // 8, 8, LANES).sum(axis=0)
        acc_nll[...] += nll.reshape(block_rows // 8, 8, LANES).sum(axis=0)

    if tail_rows < block_rows:
        # Partial tail block exists: masked path only for it, unmasked fast
        # path for every full block.  Ghost blocks (block_idx >= nblocks,
        # from the clamped index_map) match neither condition -> skipped.
        if nblocks > 1:
            @pl.when(block_idx < nblocks - 1)
            def _():
                accumulate(None)

        @pl.when(block_idx == nblocks - 1)
        def _():
            accumulate(tail_rows)
    else:
        if has_ghost:
            @pl.when(block_idx < nblocks)
            def _():
                accumulate(None)
        else:
            accumulate(None)

    @pl.when(i == pl.num_programs(1) - 1)
    def _():
        o_ref[0, :, :] = acc_sq[...]
        o_ref[1, :, :] = acc_nll[...]


def _bulk_partial_sums(x2, y2):
    """Kernel over a (rows, 128) view; returns (sum_sq_err, sum_nll) scalars."""
    rows = int(x2.shape[0])

    # block second-minor dim: multiple of native sublane tiling for the dtype
    sub = {4: 8, 2: 16, 1: 32}.get(x2.dtype.itemsize, 8)
    block_rows = min(MAX_BLOCK_ROWS, _round_up(rows, sub))

    nblocks = (rows + block_rows - 1) // block_rows
    num_cores = min(_num_tensorcores(), nblocks)
    blocks_per_core = (nblocks + num_cores - 1) // num_cores
    tail_rows = rows - (nblocks - 1) * block_rows          # rows in last block
    has_ghost = num_cores * blocks_per_core > nblocks

    def in_index(c, i):
        # clamp so the DMA never starts past the array; ghost blocks are
        # skipped inside the kernel via pl.when.
        return (jnp.minimum(c * blocks_per_core + i, nblocks - 1), 0)

    in_spec = pl.BlockSpec((block_rows, LANES), in_index)
    out_spec = pl.BlockSpec((pl.Squeezed(), 2, 8, LANES),
                            lambda c, i: (c, 0, 0, 0))

    kernel = functools.partial(
        _mse_entropy_kernel,
        block_rows=block_rows,
        blocks_per_core=blocks_per_core,
        nblocks=nblocks,
        tail_rows=tail_rows,
        has_ghost=has_ghost,
    )

    partials = pl.pallas_call(
        kernel,
        out_shape=jax.ShapeDtypeStruct((num_cores, 2, 8, LANES), jnp.float32),
        grid_spec=pltpu.PrefetchScalarGridSpec(
            num_scalar_prefetch=0,
            grid=(num_cores, blocks_per_core),
            in_specs=[in_spec, in_spec],
            out_specs=out_spec,
            scratch_shapes=[
                pltpu.VMEM((8, LANES), jnp.float32),   # sum of squared error
                pltpu.VMEM((8, LANES), jnp.float32),   # sum of NLL terms
            ],
        ),
        compiler_params=pltpu.CompilerParams(
            dimension_semantics=("parallel", "arbitrary"),
            vmem_limit_bytes=VMEM_LIMIT_BYTES),
    )(x2, y2)

    # single cross-lane reduction, once, outside the kernel
    return jnp.sum(partials[:, 0]), jnp.sum(partials[:, 1])


def _remainder_partial_sums(x, y):
    """Plain-JAX epilogue for the <128-element remainder of ragged inputs."""
    x = x.astype(jnp.float32)
    y = y.astype(jnp.float32)
    d = x - y
    return jnp.sum(d * d), jnp.sum(_entropy_terms(x, y))


def mse_entropy_pallas(x, y, lam=LAM):
    assert x.ndim == 1 and x.shape == y.shape
    n = int(x.shape[0])
    n_bulk = (n // LANES) * LANES

    sq_sum = jnp.float32(0.0)
    nll_sum = jnp.float32(0.0)

    if n_bulk:
        if n_bulk == n:
            xb = x.reshape(-1, LANES)          # free: contiguous reinterpretation
            yb = y.reshape(-1, LANES)
        else:
            # 128-aligned bulk; no O(N) zero-padding pass.
            xb = x[:n_bulk].reshape(-1, LANES)
            yb = y[:n_bulk].reshape(-1, LANES)
        s, e = _bulk_partial_sums(xb, yb)
        sq_sum = sq_sum + s
        nll_sum = nll_sum + e

    if n_bulk != n:
        s, e = _remainder_partial_sums(x[n_bulk:], y[n_bulk:])
        sq_sum = sq_sum + s
        nll_sum = nll_sum + e

    n_f = jnp.float32(n)
    return sq_sum / n_f + jnp.float32(lam) * (nll_sum / n_f)


def mse_entropy_ref(x, y, lam=LAM):
    """Pure-JAX reference mirroring the torch forward literally."""
    x = x.astype(jnp.float32)
    y = y.astype(jnp.float32)
    mse = jnp.mean((x - y) ** 2)
    more = jnp.exp(x) / (1.0 + jnp.exp(x))
    less = 1.0 - more
    logits = jnp.stack([more, less], axis=-1)
    logp = jax.nn.log_softmax(logits, axis=-1)
    y_idx = jnp.where(y >= 0, 0, 1)
    picked = jnp.take_along_axis(logp, y_idx[:, None], axis=-1)[:, 0]
    nll = jnp.mean(-picked) * lam
    return mse + nll


if __name__ == "__main__":
    key = jax.random.PRNGKey(0)
    kx, ky, kx2, ky2, kx3, ky3 = jax.random.split(key, 6)

    # small 1-D regression output / target (NLLLoss requires 1-D x here)
    N = 2048
    x = jax.random.normal(kx, (N,), dtype=jnp.float32)
    y = jax.random.normal(ky, (N,), dtype=jnp.float32)
    loss = jax.block_until_ready(mse_entropy_pallas(x, y))
    ref = mse_entropy_ref(x, y)
    assert jnp.allclose(loss, ref, rtol=1e-5, atol=1e-5), (loss, ref)

    # ragged size exercising the partial-tail-block mask + JAX remainder path
    N2 = 1000
    x2 = jax.random.normal(kx2, (N2,), dtype=jnp.float32)
    y2 = jax.random.normal(ky2, (N2,), dtype=jnp.float32)
    loss2 = jax.block_until_ready(mse_entropy_pallas(x2, y2))
    ref2 = mse_entropy_ref(x2, y2)
    assert jnp.allclose(loss2, ref2, rtol=1e-5, atol=1e-5), (loss2, ref2)

    # bf16 inputs stream narrow over HBM and are upcast inside the kernel
    N3 = 4096
    x3 = jax.random.normal(kx3, (N3,), dtype=jnp.float32).astype(jnp.bfloat16)
    y3 = jax.random.normal(ky3, (N3,), dtype=jnp.float32).astype(jnp.bfloat16)
    loss3 = jax.block_until_ready(mse_entropy_pallas(x3, y3))
    ref3 = mse_entropy_ref(x3, y3)
    assert jnp.allclose(loss3, ref3, rtol=1e-5, atol=1e-5), (loss3, ref3)

    print("KERNEL_OK")
</pallas_src>

<mosaic_0001>
module attributes {stable_mosaic.version = 11 : i64} {
  func.func @_mse_entropy_kernel(%arg0: i32, %arg1: i32, %arg2: memref<16x128xf32, #tpu.memory_space<vmem>>, %arg3: memref<16x128xf32, #tpu.memory_space<vmem>>, %arg4: memref<1x2x8x128xf32, #tpu.memory_space<vmem>>, %arg5: memref<8x128xf32, #tpu.memory_space<vmem>>, %arg6: memref<8x128xf32, #tpu.memory_space<vmem>>) attributes {dimension_semantics = [#tpu.dimension_semantics<parallel>, #tpu.dimension_semantics<arbitrary>], iteration_bounds = array<i64: 1, 1>, scalar_prefetch = 0 : i64, scratch_operands = 2 : i64, tpu.core_type = #tpu.core_type<tc>, window_params = [{transform_indices = @transform_0, window_bounds = array<i64: 16, 128>}, {transform_indices = @transform_1, window_bounds = array<i64: 16, 128>}, {transform_indices = @transform_2, window_bounds = array<i64: 1, 2, 8, 128>}]} {
    %c0_i32 = arith.constant 0 : i32
    %0 = arith.cmpi eq, %arg1, %c0_i32 : i32
    %1 = arith.extui %0 : i1 to i32
    %c0_i32_0 = arith.constant 0 : i32
    %2 = arith.cmpi ne, %1, %c0_i32_0 : i32
    scf.if %2 {
      %cst_21 = arith.constant 0.000000e+00 : f32
      %39 = vector.broadcast %cst_21 : f32 to vector<8x128xf32>
      %c0_22 = arith.constant 0 : index
      %c0_23 = arith.constant 0 : index
      %40 = vector.load %arg5[%c0_22, %c0_23] : memref<8x128xf32, #tpu.memory_space<vmem>>, vector<8x128xf32>
      tpu.vector_store %arg5[%c0_22, %c0_23], %39 {strides = array<i32>} : memref<8x128xf32, #tpu.memory_space<vmem>>, vector<8x128xf32>,
      %cst_24 = arith.constant 0.000000e+00 : f32
      %41 = vector.broadcast %cst_24 : f32 to vector<8x128xf32>
      %c0_25 = arith.constant 0 : index
      %c0_26 = arith.constant 0 : index
      %42 = vector.load %arg6[%c0_25, %c0_26] : memref<8x128xf32, #tpu.memory_space<vmem>>, vector<8x128xf32>
      tpu.vector_store %arg6[%c0_25, %c0_26], %41 {strides = array<i32>} : memref<8x128xf32, #tpu.memory_space<vmem>>, vector<8x128xf32>,
    } else {
    }
    %c0 = arith.constant 0 : index
    %c0_1 = arith.constant 0 : index
    %3 = vector.load %arg2[%c0, %c0_1] : memref<16x128xf32, #tpu.memory_space<vmem>>, vector<16x128xf32>
    %c0_2 = arith.constant 0 : index
    %c0_3 = arith.constant 0 : index
    %4 = vector.load %arg3[%c0_2, %c0_3] : memref<16x128xf32, #tpu.memory_space<vmem>>, vector<16x128xf32>
    %5 = arith.subf %3, %4 : vector<16x128xf32>
    %6 = arith.mulf %5, %5 : vector<16x128xf32>
    %cst = arith.constant 5.000000e-01 : f32
    %7 = vector.broadcast %cst : f32 to vector<16x128xf32>
    %8 = arith.mulf %7, %3 : vector<16x128xf32>
    %9 = math.tanh %8 : vector<16x128xf32>
    %cst_4 = arith.constant 5.000000e-01 : f32
    %10 = vector.broadcast %cst_4 : f32 to vector<16x128xf32>
    %11 = arith.mulf %10, %9 : vector<16x128xf32>
    %12 = math.absf %11 : vector<16x128xf32>
    %cst_5 = arith.constant 0.000000e+00 : f32
    %13 = vector.broadcast %cst_5 : f32 to vector<16x128xf32>
    %14 = arith.cmpf oge, %4, %13 : vector<16x128xf32>
    %cst_6 = arith.constant 0.000000e+00 : f32
    %15 = vector.broadcast %cst_6 : f32 to vector<16x128xf32>
    %16 = arith.subf %15, %11 : vector<16x128xf32>
    %17 = arith.select %14, %11, %16 : vector<16x128xi1>, vector<16x128xf32>
    %18 = arith.subf %12, %17 : vector<16x128xf32>
    %cst_7 = arith.constant -2.000000e+00 : f32
    %19 = vector.broadcast %cst_7 : f32 to vector<16x128xf32>
    %20 = arith.mulf %19, %12 : vector<16x128xf32>
    %21 = math.exp %20 : vector<16x128xf32>
    %cst_8 = arith.constant 1.000000e+00 : f32
    %22 = vector.broadcast %cst_8 : f32 to vector<16x128xf32>
    %23 = arith.addf %22, %21 : vector<16x128xf32>
    %24 = math.log %23 : vector<16x128xf32>
    %25 = arith.addf %18, %24 : vector<16x128xf32>
    %c0_9 = arith.constant 0 : index
    %c0_10 = arith.constant 0 : index
    %26 = vector.load %arg5[%c0_9, %c0_10] : memref<8x128xf32, #tpu.memory_space<vmem>>, vector<8x128xf32>
    %27 = vector.shape_cast %6 : vector<16x128xf32> to vector<2x8x128xf32>
    %cst_11 = arith.constant dense<0.000000e+00> : vector<8x128xf32>
    %28 = vector.multi_reduction <add>, %27, %cst_11 [0] : vector<2x8x128xf32> to vector<8x128xf32>
    %29 = arith.addf %26, %28 : vector<8x128xf32>
    %c0_12 = arith.constant 0 : index
    %c0_13 = arith.constant 0 : index
    %30 = vector.load %arg5[%c0_12, %c0_13] : memref<8x128xf32, #tpu.memory_space<vmem>>, vector<8x128xf32>
    tpu.vector_store %arg5[%c0_12, %c0_13], %29 {strides = array<i32>} : memref<8x128xf32, #tpu.memory_space<vmem>>, vector<8x128xf32>,
    %c0_14 = arith.constant 0 : index
    %c0_15 = arith.constant 0 : index
    %31 = vector.load %arg6[%c0_14, %c0_15] : memref<8x128xf32, #tpu.memory_space<vmem>>, vector<8x128xf32>
    %32 = vector.shape_cast %25 : vector<16x128xf32> to vector<2x8x128xf32>
    %cst_16 = arith.constant dense<0.000000e+00> : vector<8x128xf32>
    %33 = vector.multi_reduction <add>, %32, %cst_16 [0] : vector<2x8x128xf32> to vector<8x128xf32>
    %34 = arith.addf %31, %33 : vector<8x128xf32>
    %c0_17 = arith.constant 0 : index
    %c0_18 = arith.constant 0 : index
    %35 = vector.load %arg6[%c0_17, %c0_18] : memref<8x128xf32, #tpu.memory_space<vmem>>, vector<8x128xf32>
    tpu.vector_store %arg6[%c0_17, %c0_18], %34 {strides = array<i32>} : memref<8x128xf32, #tpu.memory_space<vmem>>, vector<8x128xf32>,
    %c0_i32_19 = arith.constant 0 : i32
    %36 = arith.cmpi eq, %arg1, %c0_i32_19 : i32
    %37 = arith.extui %36 : i1 to i32
    %c0_i32_20 = arith.constant 0 : i32
    %38 = arith.cmpi ne, %37, %c0_i32_20 : i32
    scf.if %38 {
      %c0_21 = arith.constant 0 : index
      %c0_22 = arith.constant 0 : index
      %39 = vector.load %arg5[%c0_21, %c0_22] : memref<8x128xf32, #tpu.memory_space<vmem>>, vector<8x128xf32>
      %c0_23 = arith.constant 0 : index
      %c0_24 = arith.constant 0 : index
      %c0_25 = arith.constant 0 : index
      %c0_26 = arith.constant 0 : index
      %40 = vector.load %arg4[%c0_23, %c0_24, %c0_25, %c0_26] : memref<1x2x8x128xf32, #tpu.memory_space<vmem>>, vector<1x1x8x128xf32>
      %41 = vector.shape_cast %40 : vector<1x1x8x128xf32> to vector<8x128xf32>
      %42 = vector.shape_cast %39 : vector<8x128xf32> to vector<1x1x8x128xf32>
      tpu.vector_store %arg4[%c0_23, %c0_24, %c0_25, %c0_26], %42 {strides = array<i32>} : memref<1x2x8x128xf32, #tpu.memory_space<vmem>>, vector<1x1x8x128xf32>,
      %c0_27 = arith.constant 0 : index
      %c0_28 = arith.constant 0 : index
      %43 = vector.load %arg6[%c0_27, %c0_28] : memref<8x128xf32, #tpu.memory_space<vmem>>, vector<8x128xf32>
      %c0_29 = arith.constant 0 : index
      %c1 = arith.constant 1 : index
      %c0_30 = arith.constant 0 : index
      %c0_31 = arith.constant 0 : index
      %44 = vector.load %arg4[%c0_29, %c1, %c0_30, %c0_31] : memref<1x2x8x128xf32, #tpu.memory_space<vmem>>, vector<1x1x8x128xf32>
      %45 = vector.shape_cast %44 : vector<1x1x8x128xf32> to vector<8x128xf32>
      %46 = vector.shape_cast %43 : vector<8x128xf32> to vector<1x1x8x128xf32>
      tpu.vector_store %arg4[%c0_29, %c1, %c0_30, %c0_31], %46 {strides = array<i32>} : memref<1x2x8x128xf32, #tpu.memory_space<vmem>>, vector<1x1x8x128xf32>,
    } else {
    }
    return
  }
  func.func @transform_0(%arg0: i32, %arg1: i32) -> (i32, i32) {
    %c1_i32 = arith.constant 1 : i32
    %0 = arith.muli %arg0, %c1_i32 : i32
    %1 = arith.addi %0, %arg1 : i32
    %c0_i32 = arith.constant 0 : i32
    %2 = arith.minsi %1, %c0_i32 : i32
    %c0_i32_0 = arith.constant 0 : i32
    %c0_i32_1 = arith.constant 0 : i32
    return %2, %c0_i32_0 : i32, i32
  }
  func.func @transform_1(%arg0: i32, %arg1: i32) -> (i32, i32) {
    %c1_i32 = arith.constant 1 : i32
    %0 = arith.muli %arg0, %c1_i32 : i32
    %1 = arith.addi %0, %arg1 : i32
    %c0_i32 = arith.constant 0 : i32
    %2 = arith.minsi %1, %c0_i32 : i32
    %c0_i32_0 = arith.constant 0 : i32
    %c0_i32_1 = arith.constant 0 : i32
    return %2, %c0_i32_0 : i32, i32
  }
  func.func @transform_2(%arg0: i32, %arg1: i32) -> (i32, i32, i32, i32) {
    %c0_i32 = arith.constant 0 : i32
    %c0_i32_0 = arith.constant 0 : i32
    %c0_i32_1 = arith.constant 0 : i32
    %c0_i32_2 = arith.constant 0 : i32
    return %arg0, %c0_i32, %c0_i32_0, %c0_i32_1 : i32, i32, i32, i32
  }
}

</mosaic_0001>

<llo_original>
// kernel: tpu_custom_call.1
$region0: #{tpu_custom_call.1}
  #allocation0 [shape = 'u32[]', space=smem, size = 0x4, offset = 0x4, fixed_abs, tag = 'smem constant byte address 0x4 - core index']
  #allocation1 [shape = 'u32[72,128]{1,0:T(1,128)}', space=vmem, size = 0x9000, scoped, tag = 'internal scratch']
  #allocation2 [shape = 'f32[8,128]{1,0:T(8,128)}', space=vmem, size = 0x1000, scoped, tag = 'scratch operand']
  #allocation3 [shape = 'f32[8,128]{1,0:T(8,128)}', space=vmem, size = 0x1000, scoped, tag = 'scratch operand']
  %s0 = inlined_call_operand.hbm [shape: f32[16,128], index: 0, kind: input, shape index: {}]
  %s1 = inlined_call_operand.hbm [shape: f32[16,128], index: 1, kind: input, shape index: {}]
  %s2 = inlined_call_operand.hbm [shape: f32[1,2,8,128], index: 2, kind: output, shape index: {}]
  %s3 = sld [smem:[#allocation0]]
  $region34: #{tpu_custom_call.1} parent=0
    _
  %s5 = ssub.s32 1, %s3
  %s6 = scalar_select 0, %s5, %s3
  $region1: #{tpu_custom_call.1} parent=0
    #allocation4 [shape = 'u8[8192]{0}', space=vmem, size = 0x2000, scoped, tag = 'input window, operand 0, single buffered']
    #allocation5 [shape = 's32[1]{0}', space=sflag, size = 0x4, scoped, tag = 'scoped memory for tpu_custom_call.1']
    #allocation6 [shape = 's32[1]{0}', space=sflag, size = 0x4, scoped, tag = 'scoped memory for tpu_custom_call.1']
    #allocation7 [shape = 'u8[8192]{0}', space=vmem, size = 0x2000, scoped, tag = 'input window, operand 1, single buffered']
    #allocation8 [shape = 's32[1]{0}', space=sflag, size = 0x4, scoped, tag = 'scoped memory for tpu_custom_call.1']
    #allocation9 [shape = 'u8[8192]{0}', space=vmem, size = 0x2000, scoped, tag = 'output window, operand 0, single buffered']
    %7 = vsyncpa [#allocation5], 0
    %8 = vsyncpa [#allocation8], 0
    %9 = vsyncpa [#allocation6], 0
    // Predicated region
    $region2: #{tpu_custom_call.1} parent=1 // pred_check
      _
    $region3: #{tpu_custom_call.1} parent=1 // pred_check_branch
      %11 = sbr.rel (0) target = $region5
    $region4: #{tpu_custom_call.1} parent=1 // pred_region
      %s12 = sadd.s32 0, 0
      %p13 = scmp.lt.s32.totalorder %s12, 0
      %s14 = scalar_select %p13, %s12, 0
      %s15 = smul.u32 2, %s14
      %17 = vsyncadd [#allocation5], 0
      %s18 = smul.addr %s15, 8
      %s19 = scalar_lea.hbm %s0, %s18
      %s20 = sshll.u32 %s19, 4
      %s21 = int_to_ptr.hbm [resolvable:$true] %s20
      %s22 = sshll.u32 [#allocation4], 4
      %s23 = int_to_ptr.vmem [resolvable:$true] %s22
      %28 = dma.hbm_to_vmem [thread:$0]  %s21, 256, %s23, [#allocation5], 128, 128, 8
    $region5: #{tpu_custom_call.1} parent=1 // pred_fallthru
      _
    // Predicated region
    $region6: #{tpu_custom_call.1} parent=1 // pred_check
      _
    $region7: #{tpu_custom_call.1} parent=1 // pred_check_branch
      %30 = sbr.rel (0) target = $region9
    $region8: #{tpu_custom_call.1} parent=1 // pred_region
      %s31 = sadd.s32 0, 0
      %p32 = scmp.lt.s32.totalorder %s31, 0
      %s33 = scalar_select %p32, %s31, 0
      %s34 = smul.u32 2, %s33
      %36 = vsyncadd [#allocation8], 0
      %s37 = smul.addr %s34, 8
      %s38 = scalar_lea.hbm %s1, %s37
      %s39 = sshll.u32 %s38, 4
      %s40 = int_to_ptr.hbm [resolvable:$true] %s39
      %s41 = sshll.u32 [#allocation7], 4
      %s42 = int_to_ptr.vmem [resolvable:$true] %s41
      %47 = dma.hbm_to_vmem [thread:$0]  %s40, 256, %s42, [#allocation8], 128, 128, 8
    $region9: #{tpu_custom_call.1} parent=1 // pred_fallthru
      _
    // Predicated region
    $region10: #{tpu_custom_call.1} parent=1 // pred_check
      _
    $region11: #{tpu_custom_call.1} parent=1 // pred_check_branch
      %49 = sbr.rel (0) target = $region13
    $region12: #{tpu_custom_call.1} parent=1 // pred_region
      %51 = dma.done [#allocation5], 256
    $region13: #{tpu_custom_call.1} parent=1 // pred_fallthru
      _
    // Predicated region
    $region14: #{tpu_custom_call.1} parent=1 // pred_check
      _
    $region15: #{tpu_custom_call.1} parent=1 // pred_check_branch
      %53 = sbr.rel (0) target = $region17
    $region16: #{tpu_custom_call.1} parent=1 // pred_region
      %55 = dma.done [#allocation8], 256
    $region17: #{tpu_custom_call.1} parent=1 // pred_fallthru
      _
    %s56 = sadd.s32 0, 0
    %p57 = scmp.lt.s32.totalorder %s56, 0
    %s58 = scalar_select %p57, %s56, 0
    %s59 = smul.u32 2, %s58
    %s60 = sadd.s32 0, 0
    %p61 = scmp.lt.s32.totalorder %s60, 0
    %s62 = scalar_select %p61, %s60, 0
    %s63 = smul.u32 2, %s62
    %p64 = scmp.eq.s32.totalorder 0, 0
    // Predicated region
    $region18: #{tpu_custom_call.1} parent=1 // pred_check
      %p65 = pneg %p64
    $region19: #{tpu_custom_call.1} parent=1 // pred_check_branch
      %67 = sbr.rel (%p65) target = $region21
    $region20: #{tpu_custom_call.1} parent=1 // pred_region
      %68 = vst [vmem:[#allocation2] sm:$0xff] 0.0
      %69 = vst [vmem:[#allocation3] sm:$0xff] 0.0
    $region21: #{tpu_custom_call.1} parent=1 // pred_fallthru
      _
    %v70 = vld [vmem:[#allocation4] sm:$0xff]
    %v71 = vld [vmem:[#allocation4 + $0x8] sm:$0xff]
    %v72 = vld [vmem:[#allocation7] sm:$0xff]
    %v73 = vld [vmem:[#allocation7 + $0x8] sm:$0xff]
    %v74 = vsub.f32 %v70, %v72
    %v75 = vsub.f32 %v71, %v73
    %v76 = vmul.f32 %v74, %v74
    %v77 = vmul.f32 %v75, %v75
    %v78 = vmul.f32 %v70, 0.5
    %v79 = vmul.f32 %v71, 0.5
    %v80 = vtanh.pop %v78
    %v81 = vtanh.pop %v79
    %v82 = vmul.f32 %v80, 0.5
    %v83 = vmul.f32 %v81, 0.5
    %v84 = vand.u32 2147483647, %v82
    %v85 = vand.u32 2147483647, %v83
    %vm86 = vcmp.ge.f32.partialorder %v72, 0.0
    %vm87 = vcmp.ge.f32.partialorder %v73, 0.0
    %v88 = vsub.f32 0.0, %v82
    %v89 = vsub.f32 0.0, %v83
    %v90 = vsel %vm86, %v82, %v88
    %v91 = vsel %vm87, %v83, %v89
    %v92 = vsub.f32 %v84, %v90
    %v93 = vsub.f32 %v85, %v91
    %v94 = vmul.f32 %v84, -2.0
    %v95 = vmul.f32 %v85, -2.0
    %v96 = vmul.f32 %v94, 1.442695
    %v97 = vpow.pop %v96
    %v98 = vmul.f32 %v95, 1.442695
    %v99 = vpow.pop %v98
    %v100 = vadd.f32 %v97, 1.0
    %v101 = vadd.f32 %v99, 1.0
    %v102 = vlog2.pop %v100
    %v103 = vmul.f32 %v102, 0.6931472
    %v104 = vlog2.pop %v101
    %v105 = vmul.f32 %v104, 0.6931472
    %v106 = vadd.f32 %v92, %v103
    %v107 = vadd.f32 %v93, %v105
    %v108 = vld [vmem:[#allocation2] sm:$0xff]
    %v109 = vadd.f32 %v76, %v77
    %v110 = vadd.f32 %v108, %v109
    %111 = vst [vmem:[#allocation2] sm:$0xff] %v110
    %v112 = vld [vmem:[#allocation3] sm:$0xff]
    %v113 = vadd.f32 %v106, %v107
    %v114 = vadd.f32 %v112, %v113
    %115 = vst [vmem:[#allocation3] sm:$0xff] %v114
    // Predicated region
    $region22: #{tpu_custom_call.1} parent=1 // pred_check
      %p116 = pneg %p64
    $region23: #{tpu_custom_call.1} parent=1 // pred_check_branch
      %118 = sbr.rel (%p116) target = $region25
    $region24: #{tpu_custom_call.1} parent=1 // pred_region
      %v119 = vld [vmem:[#allocation2] sm:$0xff]
      %120 = vst [vmem:[#allocation9] sm:$0xff] %v119
      %v121 = vld [vmem:[#allocation3] sm:$0xff]
      %s122 = scalar_lea.vmem [#allocation9], 8
      %123 = vst [vmem:[%s122] sm:$0xff] %v121
    $region25: #{tpu_custom_call.1} parent=1 // pred_fallthru
      _
    // Predicated region
    $region26: #{tpu_custom_call.1} parent=1 // pred_check
      _
    $region27: #{tpu_custom_call.1} parent=1 // pred_check_branch
      %125 = sbr.rel (0) target = $region29
    $region28: #{tpu_custom_call.1} parent=1 // pred_region
      %127 = vsyncadd [#allocation6], 0
      %s128 = sshll.u32 [#allocation9], 4
      %s129 = int_to_ptr.vmem [resolvable:$true] %s128
      %s130 = sshll.u32 %s2, 4
      %s131 = int_to_ptr.hbm [resolvable:$true] %s130
      %136 = dma.vmem_to_hbm [thread:$0]  %s129, 256, %s131, [#allocation6], 128, 128, 8
    $region29: #{tpu_custom_call.1} parent=1 // pred_fallthru
      _
    // Predicated region
    $region30: #{tpu_custom_call.1} parent=1 // pred_check
      _
    $region31: #{tpu_custom_call.1} parent=1 // pred_check_branch
      %138 = sbr.rel (0) target = $region33
    $region32: #{tpu_custom_call.1} parent=1 // pred_region
      %140 = dma.done [#allocation6], 256
    $region33: #{tpu_custom_call.1} parent=1 // pred_fallthru
      _
    %141 = vsyncpa [#allocation5], 1
    %142 = vsyncpa [#allocation8], 1
    %143 = vsyncpa [#allocation6], 1

</llo_original>
